<compile_context>
chip_gen: v6e
topology: v6e:2x2x1
jax: 0.10.0
libtpu: 0.0.40
codegen_flags: <defaults>
</compile_context>

<pallas_src>
import jax
import jax.numpy as jnp
import numpy as np
from jax.experimental import pallas as pl
from jax.experimental.pallas import tpu as pltpu


def _channelwise_mul_kernel(w_ref, x_ref, o_ref):
    # w_ref: (TR, 1)  per-row (= per (n, c) pair) channel weight
    # x_ref: (TR, TL) lane-dense tile of the flattened feature map
    # o_ref: (TR, TL)
    o_ref[...] = (w_ref[...] * x_ref[...]).astype(o_ref.dtype)


def _pick_tile(dim, multiple, cap):
    """Largest divisor of `dim` that is a multiple of `multiple` and <= cap.

    Falls back to the full dim (always legal for BlockSpec) if `dim` is not a
    multiple of `multiple`.
    """
    if dim % multiple != 0:
        return dim
    best = multiple
    t = multiple
    limit = min(dim, cap)
    while t <= limit:
        if dim % t == 0:
            best = t
        t += multiple
    return best


def channel_wise_multiply(x, param):
    """x: (N, C, H, W); param: (C,).  Returns param.view(1,C,1,1) * x."""
    N, C, H, W = x.shape
    R, L = N * C, H * W

    # Free reshapes (row-major contiguous) -- no extra HBM traffic.
    x2 = x.reshape(R, L)
    # Per-row weight: row r = n*C + c  ->  param[c].  Only N*C floats.
    w = jnp.tile(param.astype(x.dtype), N).reshape(R, 1)

    # Sublane-full / lane-dense tiles, capped at ~2 MiB per block (f32) so
    # double-buffered in+out fits every generation's scoped VMEM with margin.
    TR = _pick_tile(R, 8, 256)
    TL = _pick_tile(L, 128, 2048)
    grid = (R // TR, L // TL)

    out = pl.pallas_call(
        _channelwise_mul_kernel,
        out_shape=jax.ShapeDtypeStruct((R, L), x.dtype),
        grid_spec=pltpu.PrefetchScalarGridSpec(
            num_scalar_prefetch=0,
            grid=grid,
            in_specs=[
                pl.BlockSpec((TR, 1), lambda i, j: (i, 0)),
                pl.BlockSpec((TR, TL), lambda i, j: (i, j)),
            ],
            out_specs=pl.BlockSpec((TR, TL), lambda i, j: (i, j)),
        ),
        compiler_params=pltpu.CompilerParams(
            dimension_semantics=("parallel", "parallel"),
            vmem_limit_bytes=32 * 1024 * 1024,
        ),
    )(w, x2)

    return out.reshape(N, C, H, W)


def make_param(num_channels, value, dtype=jnp.float32):
    """Equivalent of ChannelWiseMultiply.init_value(value)."""
    return jnp.full((num_channels,), value, dtype=dtype)


def _reference(x, param):
    return param[None, :, None, None].astype(x.dtype) * x


if __name__ == "__main__":
    N, C, H, W = 2, 4, 16, 16

    key = jax.random.PRNGKey(0)
    kx, kp = jax.random.split(key)
    x = jax.random.normal(kx, (N, C, H, W), dtype=jnp.float32)

    # Case 1: constant init (matches init_value in the PyTorch module).
    param_const = make_param(C, 0.9)
    out_const = jax.block_until_ready(channel_wise_multiply(x, param_const))
    np.testing.assert_allclose(
        np.asarray(out_const), np.asarray(_reference(x, param_const)),
        rtol=1e-6, atol=1e-6)

    # Case 2: arbitrary per-channel weights.
    param_rand = jax.random.normal(kp, (C,), dtype=jnp.float32)
    out_rand = jax.block_until_ready(channel_wise_multiply(x, param_rand))
    np.testing.assert_allclose(
        np.asarray(out_rand), np.asarray(_reference(x, param_rand)),
        rtol=1e-6, atol=1e-6)

    print("KERNEL_OK")
</pallas_src>

<mosaic_0001>
module attributes {stable_mosaic.version = 11 : i64} {
  func.func @_channelwise_mul_kernel(%arg0: i32, %arg1: i32, %arg2: memref<8x1xf32, #tpu.memory_space<vmem>>, %arg3: memref<8x256xf32, #tpu.memory_space<vmem>>, %arg4: memref<8x256xf32, #tpu.memory_space<vmem>>) attributes {dimension_semantics = [#tpu.dimension_semantics<parallel>, #tpu.dimension_semantics<parallel>], iteration_bounds = array<i64: 1, 1>, scalar_prefetch = 0 : i64, scratch_operands = 0 : i64, tpu.core_type = #tpu.core_type<tc>, window_params = [{transform_indices = @transform_0, window_bounds = array<i64: 8, 1>}, {transform_indices = @transform_1, window_bounds = array<i64: 8, 256>}, {transform_indices = @transform_2, window_bounds = array<i64: 8, 256>}]} {
    %c0 = arith.constant 0 : index
    %c0_0 = arith.constant 0 : index
    %0 = vector.load %arg2[%c0, %c0_0] : memref<8x1xf32, #tpu.memory_space<vmem>>, vector<8x1xf32>
    %c0_1 = arith.constant 0 : index
    %c0_2 = arith.constant 0 : index
    %1 = vector.load %arg3[%c0_1, %c0_2] : memref<8x256xf32, #tpu.memory_space<vmem>>, vector<8x256xf32>
    %2 = vector.broadcast %0 : vector<8x1xf32> to vector<8x256xf32>
    %3 = arith.mulf %2, %1 : vector<8x256xf32>
    %c0_3 = arith.constant 0 : index
    %c0_4 = arith.constant 0 : index
    %4 = vector.load %arg4[%c0_3, %c0_4] : memref<8x256xf32, #tpu.memory_space<vmem>>, vector<8x256xf32>
    tpu.vector_store %arg4[%c0_3, %c0_4], %3 {strides = array<i32>} : memref<8x256xf32, #tpu.memory_space<vmem>>, vector<8x256xf32>,
    return
  }
  func.func @transform_0(%arg0: i32, %arg1: i32) -> (i32, i32) {
    %c0_i32 = arith.constant 0 : i32
    %c0_i32_0 = arith.constant 0 : i32
    return %arg0, %c0_i32 : i32, i32
  }
  func.func @transform_1(%arg0: i32, %arg1: i32) -> (i32, i32) {
    %c0_i32 = arith.constant 0 : i32
    return %arg0, %arg1 : i32, i32
  }
  func.func @transform_2(%arg0: i32, %arg1: i32) -> (i32, i32) {
    %c0_i32 = arith.constant 0 : i32
    return %arg0, %arg1 : i32, i32
  }
}

</mosaic_0001>

<llo_original>
// kernel: tpu_custom_call.1
$region0: #{tpu_custom_call.1}
  #allocation0 [shape = 'u32[]', space=smem, size = 0x4, offset = 0x4, fixed_abs, tag = 'smem constant byte address 0x4 - core index']
  #allocation1 [shape = 'u32[144,128]{1,0:T(1,128)}', space=vmem, size = 0x12000, scoped, tag = 'internal scratch']
  %s0 = inlined_call_operand.vmem [shape: f32[8,1], index: 0, kind: input, shape index: {}]
  %s1 = inlined_call_operand.hbm [shape: f32[8,256], index: 1, kind: input, shape index: {}]
  %s2 = inlined_call_operand.hbm [shape: f32[8,256], index: 2, kind: output, shape index: {}]
  %s3 = sld [smem:[#allocation0]]
  $region22: #{tpu_custom_call.1} parent=0
    _
  %s5 = ssub.s32 1, %s3
  %s6 = scalar_select 0, %s5, %s3
  $region1: #{tpu_custom_call.1} parent=0
    #allocation2 [shape = 'u8[8192]{0}', space=vmem, size = 0x2000, scoped, tag = 'input window, operand 1, single buffered']
    #allocation3 [shape = 's32[1]{0}', space=sflag, size = 0x4, scoped, tag = 'scoped memory for tpu_custom_call.1']
    #allocation4 [shape = 's32[1]{0}', space=sflag, size = 0x4, scoped, tag = 'scoped memory for tpu_custom_call.1']
    #allocation5 [shape = 'u8[8192]{0}', space=vmem, size = 0x2000, scoped, tag = 'output window, operand 0, single buffered']
    %7 = vsyncpa [#allocation3], 0
    %8 = vsyncpa [#allocation4], 0
    // Predicated region
    $region2: #{tpu_custom_call.1} parent=1 // pred_check
      _
    $region3: #{tpu_custom_call.1} parent=1 // pred_check_branch
      %10 = sbr.rel (0) target = $region5
    $region4: #{tpu_custom_call.1} parent=1 // pred_region
      _
    $region5: #{tpu_custom_call.1} parent=1 // pred_fallthru
      _
    // Predicated region
    $region6: #{tpu_custom_call.1} parent=1 // pred_check
      _
    $region7: #{tpu_custom_call.1} parent=1 // pred_check_branch
      %12 = sbr.rel (0) target = $region9
    $region8: #{tpu_custom_call.1} parent=1 // pred_region
      %s14 = ssub.s32 256, 256
      %15 = vsyncadd [#allocation3], %s14
      %s17 = sshll.u32 [#allocation2], 4
      %s18 = int_to_ptr.vmem [resolvable:$true] %s17
      %20 = dma.hbm_to_vmem [thread:$0]  %s1, 256, %s18, [#allocation3]
    $region9: #{tpu_custom_call.1} parent=1 // pred_fallthru
      _
    // Predicated region
    $region10: #{tpu_custom_call.1} parent=1 // pred_check
      _
    $region11: #{tpu_custom_call.1} parent=1 // pred_check_branch
      %22 = sbr.rel (0) target = $region13
    $region12: #{tpu_custom_call.1} parent=1 // pred_region
      %23 = dma.done [#allocation3], 256
    $region13: #{tpu_custom_call.1} parent=1 // pred_fallthru
      _
    %v24 = vld [vmem:[%s0] sm:$0xff]
    %v25 = vld [vmem:[#allocation2] sm:$0xff]
    %v26 = vld [vmem:[#allocation2 + $0x8] sm:$0xff]
    %28 = vset.pattern.permute.xlu0 0
    %29 = vperm.xlu0 %28, %v24
    %v30 = vpop.permute.xlu0 %29
    %v32 = vmul.f32 %v30, %v25
    %v33 = vmul.f32 %v30, %v26
    %34 = vst [vmem:[#allocation5] sm:$0xff] %v32
    %35 = vst [vmem:[#allocation5 + $0x8] sm:$0xff] %v33
    // Predicated region
    $region14: #{tpu_custom_call.1} parent=1 // pred_check
      _
    $region15: #{tpu_custom_call.1} parent=1 // pred_check_branch
      %37 = sbr.rel (0) target = $region17
    $region16: #{tpu_custom_call.1} parent=1 // pred_region
      %s39 = ssub.s32 256, 256
      %40 = vsyncadd [#allocation4], %s39
      %s42 = sshll.u32 [#allocation5], 4
      %s43 = int_to_ptr.vmem [resolvable:$true] %s42
      %45 = dma.vmem_to_hbm [thread:$0]  %s43, 256, %s2, [#allocation4]
    $region17: #{tpu_custom_call.1} parent=1 // pred_fallthru
      _
    // Predicated region
    $region18: #{tpu_custom_call.1} parent=1 // pred_check
      _
    $region19: #{tpu_custom_call.1} parent=1 // pred_check_branch
      %47 = sbr.rel (0) target = $region21
    $region20: #{tpu_custom_call.1} parent=1 // pred_region
      %48 = dma.done [#allocation4], 256
    $region21: #{tpu_custom_call.1} parent=1 // pred_fallthru
      _
    %49 = vsyncpa [#allocation3], 1
    %50 = vsyncpa [#allocation4], 1

</llo_original>
